<compile_context>
chip_gen: v6e
topology: v6e:2x2x1
jax: 0.10.0
libtpu: 0.0.40
codegen_flags: <defaults>
</compile_context>

<pallas_src>
import functools

import jax
import jax.numpy as jnp
from jax.experimental import pallas as pl
from jax.experimental.pallas import tpu as pltpu

NEG_SLOPE = 0.2


def _leaky_relu(x):
    return jnp.where(x > 0, x, NEG_SLOPE * x)


def _dilated_unit_kernel(x_ref, halo_ref, w1_ref, b1_ref, w2_ref, b2_ref,
                         o_ref, win_ref, stk_ref, *,
                         tile_l, kernel_size, dilation, pad_l, pad_r,
                         win_off, mxu_dtype):
    """One (batch, L-tile) grid step.  NCL layout: C on sublanes, L on lanes.

    x_ref:    (1, C, TL)     current input tile (f32)
    halo_ref: (1, 1, C, hw)  [left halo | right halo] columns (zero at edges)
    w1_ref:   (C, K*C)       fused dilated-conv weight (mxu_dtype)
    b1_ref:   (C, 1)         conv1 bias (f32)
    w2_ref:   (C, C)         1x1 conv weight (mxu_dtype)
    b2_ref:   (C, 1)         conv2 bias (f32)
    o_ref:    (1, C, TL)
    win_ref:  (C, win_off + TL + pad_r)  scratch: LeakyReLU'd, halo-extended
              window; the tile starts at lane `win_off` (128-aligned).
    stk_ref:  (K*C, TL)      scratch: K shifted tap views stacked on sublanes.
    """
    C = x_ref.shape[1]

    # --- LeakyReLU + assemble halo-extended window in VMEM -----------------
    # The big store (the tile itself) is lane-aligned -> unmasked vst; only
    # the tiny halo writes and the shifted tap reads are lane-offset.
    win_ref[:, win_off:win_off + tile_l] = (
        _leaky_relu(x_ref[0]).astype(mxu_dtype))
    if pad_l or pad_r:
        h = halo_ref[0, 0]                                   # (C, hw), tiny
        if pad_l:
            win_ref[:, win_off - pad_l:win_off] = (
                _leaky_relu(h[:, 0:pad_l]).astype(mxu_dtype))
        if pad_r:
            win_ref[:, win_off + tile_l:win_off + tile_l + pad_r] = (
                _leaky_relu(h[:, pad_l:pad_l + pad_r]).astype(mxu_dtype))

    # --- Dilated conv as ONE fused matmul (contraction = K*C) --------------
    base = win_off - pad_l
    for k in range(kernel_size):                             # static unroll
        off = base + k * dilation
        stk_ref[k * C:(k + 1) * C, :] = win_ref[:, off:off + tile_l]
    y = jnp.dot(w1_ref[...], stk_ref[...],
                preferred_element_type=jnp.float32)          # (C, TL) f32
    y = y + b1_ref[...]                                      # (C,1) broadcast

    # --- LeakyReLU -> 1x1 conv (second matmul) -> bias ----------------------
    z = _leaky_relu(y).astype(mxu_dtype)
    out = jnp.dot(w2_ref[...], z, preferred_element_type=jnp.float32)
    out = out + b2_ref[...]
    o_ref[0] = out.astype(o_ref.dtype)                       # lane-dense store


def _pick_tile_l(L, max_tile_l):
    """Largest multiple of 128 that divides L and is <= max_tile_l, else L."""
    if L <= max_tile_l:
        return L
    for t in range((max_tile_l // 128) * 128, 127, -128):
        if L % t == 0:
            return t
    return L


def _build_halos(x, nt, tile_l, pad_l, pad_r):
    """Per-tile neighbor columns: (B, nt, C, pad_l+pad_r), zeros at edges.

    Tiny (~pad/tile fraction of x); replaces the full HBM zero-pad of v1.
    """
    B, C, _ = x.shape
    if pad_l + pad_r == 0:
        return jnp.zeros((B, nt, C, 1), x.dtype)
    xt = x.reshape(B, C, nt, tile_l)
    left = jnp.concatenate(
        [jnp.zeros((B, C, 1, pad_l), x.dtype),
         xt[:, :, :nt - 1, tile_l - pad_l:tile_l]], axis=2)   # (B,C,nt,pad_l)
    right = jnp.concatenate(
        [xt[:, :, 1:, 0:pad_r],
         jnp.zeros((B, C, 1, pad_r), x.dtype)], axis=2)       # (B,C,nt,pad_r)
    halo = jnp.concatenate([left, right], axis=-1)            # (B,C,nt,hw)
    return jnp.transpose(halo, (0, 2, 1, 3))                  # (B,nt,C,hw)


def dilated_unit(x_ncl, w1, b1, w2, b2, *, kernel_size, dilation,
                 max_tile_l=1024, mxu_dtype=jnp.bfloat16):
    """x_ncl: (B, C, L) float32 (PyTorch Conv1d layout).  Returns (B, C, L).

    w1: (C, C, kernel_size) dilated Conv1d weight, b1: (C,)
    w2: (C, C, 1)           1x1 Conv1d weight,     b2: (C,)
    """
    B, C, L = x_ncl.shape
    K = kernel_size
    pad_total = (K - 1) * dilation
    pad_l = pad_total // 2
    pad_r = pad_total - pad_l

    tile_l = _pick_tile_l(L, max_tile_l)
    if max((pad_l, pad_r)) > tile_l:
        tile_l = L            # halo must come from the immediate neighbor tile
    nt = L // tile_l
    hw = max(pad_total, 1)

    # Lane offset of the tile inside the window scratch (128-aligned).
    win_off = 0 if pad_l == 0 else ((pad_l + 127) // 128) * 128
    win_w = win_off + tile_l + pad_r

    halos = _build_halos(x_ncl, nt, tile_l, pad_l, pad_r)

    # Weights in matmul form (torch Conv1d weight is (C_out, C_in, K)).
    #   conv1: out = W1f @ stack, W1f[c_out, k*C + c_in] = w1[c_out, c_in, k]
    w1f = jnp.transpose(w1, (0, 2, 1)).reshape(C, K * C).astype(mxu_dtype)
    w2m = w2[:, :, 0].astype(mxu_dtype)                       # (C_out, C_in)
    b1c = b1.reshape(C, 1).astype(jnp.float32)
    b2c = b2.reshape(C, 1).astype(jnp.float32)

    kernel = functools.partial(
        _dilated_unit_kernel,
        tile_l=tile_l, kernel_size=K, dilation=dilation,
        pad_l=pad_l, pad_r=pad_r, win_off=win_off, mxu_dtype=mxu_dtype)

    bpe = jnp.dtype(x_ncl.dtype).itemsize
    wpe = jnp.dtype(mxu_dtype).itemsize
    cost = pl.CostEstimate(
        flops=2 * B * L * C * C * (K + 1),
        transcendentals=0,
        bytes_accessed=(2 * B * C * L + halos.size) * bpe
                       + (w1f.size + w2m.size) * wpe)

    return pl.pallas_call(
        kernel,
        out_shape=jax.ShapeDtypeStruct((B, C, L), x_ncl.dtype),
        grid_spec=pltpu.PrefetchScalarGridSpec(
            num_scalar_prefetch=0,
            grid=(B, nt),
            in_specs=[
                pl.BlockSpec((1, C, tile_l), lambda b, j: (b, 0, j)),
                pl.BlockSpec((1, 1, C, hw), lambda b, j: (b, j, 0, 0)),
                pl.BlockSpec((C, K * C), lambda b, j: (0, 0)),
                pl.BlockSpec((C, 1), lambda b, j: (0, 0)),
                pl.BlockSpec((C, C), lambda b, j: (0, 0)),
                pl.BlockSpec((C, 1), lambda b, j: (0, 0)),
            ],
            out_specs=pl.BlockSpec((1, C, tile_l), lambda b, j: (b, 0, j)),
            scratch_shapes=[
                pltpu.VMEM((C, win_w), mxu_dtype),
                pltpu.VMEM((K * C, tile_l), mxu_dtype),
            ],
        ),
        compiler_params=pltpu.CompilerParams(
            dimension_semantics=("parallel", "parallel"),
            vmem_limit_bytes=48 * 1024 * 1024),
        cost_estimate=cost,
    )(x_ncl, halos, w1f, b1c, w2m, b2c)


def _reference(x_ncl, w1, b1, w2, b2, *, kernel_size, dilation,
               mxu_dtype=jnp.float32):
    """Pure-JAX reference (lax.conv), optionally mirroring the bf16 MXU feed."""
    pad_total = (kernel_size - 1) * dilation
    pad_l = pad_total // 2
    pad_r = pad_total - pad_l
    a = _leaky_relu(x_ncl).astype(mxu_dtype)
    y = jax.lax.conv_general_dilated(
        a, w1.astype(mxu_dtype), window_strides=(1,),
        padding=[(pad_l, pad_r)], rhs_dilation=(dilation,),
        dimension_numbers=("NCH", "OIH", "NCH"),
        preferred_element_type=jnp.float32) + b1[None, :, None]
    z = _leaky_relu(y).astype(mxu_dtype)
    out = jax.lax.conv_general_dilated(
        z, w2.astype(mxu_dtype), window_strides=(1,), padding=[(0, 0)],
        dimension_numbers=("NCH", "OIH", "NCH"),
        preferred_element_type=jnp.float32) + b2[None, :, None]
    return out


if __name__ == "__main__":
    B, C, L = 2, 32, 1024
    KERNEL_SIZE, DILATION = 3, 3

    key = jax.random.PRNGKey(0)
    kx, k1, kb1, k2, kb2 = jax.random.split(key, 5)
    x = jax.random.normal(kx, (B, C, L), dtype=jnp.float32)

    # Deterministic PyTorch-like init: U(-1/sqrt(fan_in), 1/sqrt(fan_in)).
    fan1 = C * KERNEL_SIZE
    bound1 = 1.0 / (fan1 ** 0.5)
    w1 = jax.random.uniform(k1, (C, C, KERNEL_SIZE), jnp.float32,
                            -bound1, bound1)                  # (C_out, C_in, K)
    b1 = jax.random.uniform(kb1, (C,), jnp.float32, -bound1, bound1)
    fan2 = C
    bound2 = 1.0 / (fan2 ** 0.5)
    w2 = jax.random.uniform(k2, (C, C, 1), jnp.float32, -bound2, bound2)
    b2 = jax.random.uniform(kb2, (C,), jnp.float32, -bound2, bound2)

    run_f32 = jax.jit(functools.partial(
        dilated_unit, kernel_size=KERNEL_SIZE, dilation=DILATION,
        max_tile_l=256, mxu_dtype=jnp.float32))
    run_bf16 = jax.jit(functools.partial(
        dilated_unit, kernel_size=KERNEL_SIZE, dilation=DILATION,
        max_tile_l=256, mxu_dtype=jnp.bfloat16))

    out_f32 = jax.block_until_ready(run_f32(x, w1, b1, w2, b2))
    out_bf16 = jax.block_until_ready(run_bf16(x, w1, b1, w2, b2))
    assert out_f32.shape == (B, C, L)
    assert out_bf16.shape == (B, C, L)

    ref_f32 = _reference(x, w1, b1, w2, b2, kernel_size=KERNEL_SIZE,
                         dilation=DILATION, mxu_dtype=jnp.float32)
    ref_bf16 = _reference(x, w1, b1, w2, b2, kernel_size=KERNEL_SIZE,
                          dilation=DILATION, mxu_dtype=jnp.bfloat16)

    # Exact-precision path vs. f32 reference: tight tolerance.
    assert jnp.allclose(out_f32, ref_f32, atol=1e-4, rtol=1e-4)
    # bf16-MXU path vs. a reference using the same bf16 feed / f32 accumulate.
    assert jnp.allclose(out_bf16, ref_bf16, atol=1e-3, rtol=1e-3)
    # And sanity vs. the full-f32 reference at bf16-level tolerance.
    assert jnp.allclose(out_bf16, ref_f32, atol=5e-2, rtol=5e-2)

    print("KERNEL_OK")
</pallas_src>

<mosaic_0001>
module attributes {stable_mosaic.version = 11 : i64} {
  func.func @_dilated_unit_kernel(%arg0: i32, %arg1: i32, %arg2: memref<1x32x256xf32, #tpu.memory_space<vmem>>, %arg3: memref<1x1x32x6xf32, #tpu.memory_space<vmem>>, %arg4: memref<32x96xf32, #tpu.memory_space<vmem>>, %arg5: memref<32x1xf32, #tpu.memory_space<vmem>>, %arg6: memref<32x32xf32, #tpu.memory_space<vmem>>, %arg7: memref<32x1xf32, #tpu.memory_space<vmem>>, %arg8: memref<1x32x256xf32, #tpu.memory_space<vmem>>, %arg9: memref<32x387xf32, #tpu.memory_space<vmem>>, %arg10: memref<96x256xf32, #tpu.memory_space<vmem>>) attributes {dimension_semantics = [#tpu.dimension_semantics<parallel>, #tpu.dimension_semantics<parallel>], iteration_bounds = array<i64: 2, 4>, scalar_prefetch = 0 : i64, scratch_operands = 2 : i64, tpu.core_type = #tpu.core_type<tc>, window_params = [{transform_indices = @transform_0, window_bounds = array<i64: 1, 32, 256>}, {transform_indices = @transform_1, window_bounds = array<i64: 1, 1, 32, 6>}, {pipeline_mode = #tpu.pipeline_mode<synchronous>, transform_indices = @transform_2, window_bounds = array<i64: 32, 96>}, {pipeline_mode = #tpu.pipeline_mode<synchronous>, transform_indices = @transform_3, window_bounds = array<i64: 32, 1>}, {pipeline_mode = #tpu.pipeline_mode<synchronous>, transform_indices = @transform_4, window_bounds = array<i64: 32, 32>}, {pipeline_mode = #tpu.pipeline_mode<synchronous>, transform_indices = @transform_5, window_bounds = array<i64: 32, 1>}, {transform_indices = @transform_6, window_bounds = array<i64: 1, 32, 256>}]} {
    %c0 = arith.constant 0 : index
    %c0_0 = arith.constant 0 : index
    %c0_1 = arith.constant 0 : index
    %0 = vector.load %arg2[%c0, %c0_0, %c0_1] : memref<1x32x256xf32, #tpu.memory_space<vmem>>, vector<1x32x256xf32>
    %1 = vector.shape_cast %0 : vector<1x32x256xf32> to vector<32x256xf32>
    %cst = arith.constant 0.000000e+00 : f32
    %2 = vector.broadcast %cst : f32 to vector<32x256xf32>
    %3 = arith.cmpf ogt, %1, %2 : vector<32x256xf32>
    %cst_2 = arith.constant 2.000000e-01 : f32
    %4 = vector.broadcast %cst_2 : f32 to vector<32x256xf32>
    %5 = arith.mulf %4, %1 : vector<32x256xf32>
    %6 = arith.select %3, %1, %5 : vector<32x256xi1>, vector<32x256xf32>
    %c0_3 = arith.constant 0 : index
    %c128 = arith.constant 128 : index
    %7 = vector.load %arg9[%c0_3, %c128] : memref<32x387xf32, #tpu.memory_space<vmem>>, vector<32x256xf32>
    tpu.vector_store %arg9[%c0_3, %c128], %6 {strides = array<i32>} : memref<32x387xf32, #tpu.memory_space<vmem>>, vector<32x256xf32>,
    %c0_4 = arith.constant 0 : index
    %c0_5 = arith.constant 0 : index
    %c0_6 = arith.constant 0 : index
    %c0_7 = arith.constant 0 : index
    %8 = vector.load %arg3[%c0_4, %c0_5, %c0_6, %c0_7] : memref<1x1x32x6xf32, #tpu.memory_space<vmem>>, vector<1x1x32x6xf32>
    %9 = vector.shape_cast %8 : vector<1x1x32x6xf32> to vector<32x6xf32>
    %10 = vector.extract_strided_slice %9 {offsets = [0, 0], sizes = [32, 3], strides = [1, 1]} : vector<32x6xf32> to vector<32x3xf32>
    %cst_8 = arith.constant 0.000000e+00 : f32
    %11 = vector.broadcast %cst_8 : f32 to vector<32x3xf32>
    %12 = arith.cmpf ogt, %10, %11 : vector<32x3xf32>
    %cst_9 = arith.constant 2.000000e-01 : f32
    %13 = vector.broadcast %cst_9 : f32 to vector<32x3xf32>
    %14 = arith.mulf %13, %10 : vector<32x3xf32>
    %15 = arith.select %12, %10, %14 : vector<32x3xi1>, vector<32x3xf32>
    %c0_10 = arith.constant 0 : index
    %c125 = arith.constant 125 : index
    %16 = vector.load %arg9[%c0_10, %c125] : memref<32x387xf32, #tpu.memory_space<vmem>>, vector<32x3xf32>
    tpu.vector_store %arg9[%c0_10, %c125], %15 {strides = array<i32>} : memref<32x387xf32, #tpu.memory_space<vmem>>, vector<32x3xf32>,
    %17 = vector.extract_strided_slice %9 {offsets = [0, 3], sizes = [32, 3], strides = [1, 1]} : vector<32x6xf32> to vector<32x3xf32>
    %cst_11 = arith.constant 0.000000e+00 : f32
    %18 = vector.broadcast %cst_11 : f32 to vector<32x3xf32>
    %19 = arith.cmpf ogt, %17, %18 : vector<32x3xf32>
    %cst_12 = arith.constant 2.000000e-01 : f32
    %20 = vector.broadcast %cst_12 : f32 to vector<32x3xf32>
    %21 = arith.mulf %20, %17 : vector<32x3xf32>
    %22 = arith.select %19, %17, %21 : vector<32x3xi1>, vector<32x3xf32>
    %c0_13 = arith.constant 0 : index
    %c384 = arith.constant 384 : index
    %23 = vector.load %arg9[%c0_13, %c384] : memref<32x387xf32, #tpu.memory_space<vmem>>, vector<32x3xf32>
    tpu.vector_store %arg9[%c0_13, %c384], %22 {strides = array<i32>} : memref<32x387xf32, #tpu.memory_space<vmem>>, vector<32x3xf32>,
    %c0_14 = arith.constant 0 : index
    %c125_15 = arith.constant 125 : index
    %24 = vector.load %arg9[%c0_14, %c125_15] : memref<32x387xf32, #tpu.memory_space<vmem>>, vector<32x256xf32>
    %c0_16 = arith.constant 0 : index
    %c0_17 = arith.constant 0 : index
    %25 = vector.load %arg10[%c0_16, %c0_17] : memref<96x256xf32, #tpu.memory_space<vmem>>, vector<32x256xf32>
    tpu.vector_store %arg10[%c0_16, %c0_17], %24 {strides = array<i32>} : memref<96x256xf32, #tpu.memory_space<vmem>>, vector<32x256xf32>,
    %c0_18 = arith.constant 0 : index
    %c128_19 = arith.constant 128 : index
    %26 = vector.load %arg9[%c0_18, %c128_19] : memref<32x387xf32, #tpu.memory_space<vmem>>, vector<32x256xf32>
    %c32 = arith.constant 32 : index
    %c0_20 = arith.constant 0 : index
    %27 = vector.load %arg10[%c32, %c0_20] : memref<96x256xf32, #tpu.memory_space<vmem>>, vector<32x256xf32>
    tpu.vector_store %arg10[%c32, %c0_20], %26 {strides = array<i32>} : memref<96x256xf32, #tpu.memory_space<vmem>>, vector<32x256xf32>,
    %c0_21 = arith.constant 0 : index
    %c131 = arith.constant 131 : index
    %28 = vector.load %arg9[%c0_21, %c131] : memref<32x387xf32, #tpu.memory_space<vmem>>, vector<32x256xf32>
    %c64 = arith.constant 64 : index
    %c0_22 = arith.constant 0 : index
    %29 = vector.load %arg10[%c64, %c0_22] : memref<96x256xf32, #tpu.memory_space<vmem>>, vector<32x256xf32>
    tpu.vector_store %arg10[%c64, %c0_22], %28 {strides = array<i32>} : memref<96x256xf32, #tpu.memory_space<vmem>>, vector<32x256xf32>,
    %c0_23 = arith.constant 0 : index
    %c0_24 = arith.constant 0 : index
    %30 = vector.load %arg4[%c0_23, %c0_24] : memref<32x96xf32, #tpu.memory_space<vmem>>, vector<32x96xf32>
    %c0_25 = arith.constant 0 : index
    %c0_26 = arith.constant 0 : index
    %31 = vector.load %arg10[%c0_25, %c0_26] : memref<96x256xf32, #tpu.memory_space<vmem>>, vector<96x256xf32>
    %cst_27 = arith.constant dense<0.000000e+00> : vector<32x256xf32>
    %32 = tpu.matmul %30, %31, %cst_27 {dimension_numbers = #tpu.dot_dimension_numbers<[1], [0], [0], [1], [0, 0, 1, 1], [], []>} : vector<32x96xf32>, vector<96x256xf32>, vector<32x256xf32> -> vector<32x256xf32>
    %c0_28 = arith.constant 0 : index
    %c0_29 = arith.constant 0 : index
    %33 = vector.load %arg5[%c0_28, %c0_29] : memref<32x1xf32, #tpu.memory_space<vmem>>, vector<32x1xf32>
    %34 = vector.broadcast %33 : vector<32x1xf32> to vector<32x256xf32>
    %35 = arith.addf %32, %34 : vector<32x256xf32>
    %cst_30 = arith.constant 0.000000e+00 : f32
    %36 = vector.broadcast %cst_30 : f32 to vector<32x256xf32>
    %37 = arith.cmpf ogt, %35, %36 : vector<32x256xf32>
    %cst_31 = arith.constant 2.000000e-01 : f32
    %38 = vector.broadcast %cst_31 : f32 to vector<32x256xf32>
    %39 = arith.mulf %38, %35 : vector<32x256xf32>
    %40 = arith.select %37, %35, %39 : vector<32x256xi1>, vector<32x256xf32>
    %c0_32 = arith.constant 0 : index
    %c0_33 = arith.constant 0 : index
    %41 = vector.load %arg6[%c0_32, %c0_33] : memref<32x32xf32, #tpu.memory_space<vmem>>, vector<32x32xf32>
    %cst_34 = arith.constant dense<0.000000e+00> : vector<32x256xf32>
    %42 = tpu.matmul %41, %40, %cst_34 {dimension_numbers = #tpu.dot_dimension_numbers<[1], [0], [0], [1], [0, 0, 1, 1], [], []>} : vector<32x32xf32>, vector<32x256xf32>, vector<32x256xf32> -> vector<32x256xf32>
    %c0_35 = arith.constant 0 : index
    %c0_36 = arith.constant 0 : index
    %43 = vector.load %arg7[%c0_35, %c0_36] : memref<32x1xf32, #tpu.memory_space<vmem>>, vector<32x1xf32>
    %44 = vector.broadcast %43 : vector<32x1xf32> to vector<32x256xf32>
    %45 = arith.addf %42, %44 : vector<32x256xf32>
    %c0_37 = arith.constant 0 : index
    %c0_38 = arith.constant 0 : index
    %c0_39 = arith.constant 0 : index
    %46 = vector.load %arg8[%c0_37, %c0_38, %c0_39] : memref<1x32x256xf32, #tpu.memory_space<vmem>>, vector<1x32x256xf32>
    %47 = vector.shape_cast %46 : vector<1x32x256xf32> to vector<32x256xf32>
    %48 = vector.shape_cast %45 : vector<32x256xf32> to vector<1x32x256xf32>
    tpu.vector_store %arg8[%c0_37, %c0_38, %c0_39], %48 {strides = array<i32>} : memref<1x32x256xf32, #tpu.memory_space<vmem>>, vector<1x32x256xf32>,
    return
  }
  func.func @transform_0(%arg0: i32, %arg1: i32) -> (i32, i32, i32) {
    %c0_i32 = arith.constant 0 : i32
    %c0_i32_0 = arith.constant 0 : i32
    return %arg0, %c0_i32, %arg1 : i32, i32, i32
  }
  func.func @transform_1(%arg0: i32, %arg1: i32) -> (i32, i32, i32, i32) {
    %c0_i32 = arith.constant 0 : i32
    %c0_i32_0 = arith.constant 0 : i32
    %c0_i32_1 = arith.constant 0 : i32
    return %arg0, %arg1, %c0_i32, %c0_i32_0 : i32, i32, i32, i32
  }
  func.func @transform_2(%arg0: i32, %arg1: i32) -> (i32, i32) {
    %c0_i32 = arith.constant 0 : i32
    %c0_i32_0 = arith.constant 0 : i32
    %c0_i32_1 = arith.constant 0 : i32
    return %c0_i32, %c0_i32_0 : i32, i32
  }
  func.func @transform_3(%arg0: i32, %arg1: i32) -> (i32, i32) {
    %c0_i32 = arith.constant 0 : i32
    %c0_i32_0 = arith.constant 0 : i32
    %c0_i32_1 = arith.constant 0 : i32
    return %c0_i32, %c0_i32_0 : i32, i32
  }
  func.func @transform_4(%arg0: i32, %arg1: i32) -> (i32, i32) {
    %c0_i32 = arith.constant 0 : i32
    %c0_i32_0 = arith.constant 0 : i32
    %c0_i32_1 = arith.constant 0 : i32
    return %c0_i32, %c0_i32_0 : i32, i32
  }
  func.func @transform_5(%arg0: i32, %arg1: i32) -> (i32, i32) {
    %c0_i32 = arith.constant 0 : i32
    %c0_i32_0 = arith.constant 0 : i32
    %c0_i32_1 = arith.constant 0 : i32
    return %c0_i32, %c0_i32_0 : i32, i32
  }
  func.func @transform_6(%arg0: i32, %arg1: i32) -> (i32, i32, i32) {
    %c0_i32 = arith.constant 0 : i32
    %c0_i32_0 = arith.constant 0 : i32
    return %arg0, %c0_i32, %arg1 : i32, i32, i32
  }
}

</mosaic_0001>

<llo_original>
// kernel: dilated_unit.1
$region0: #{dilated_unit.1}
  #allocation0 [shape = 'u32[]', space=smem, size = 0x4, offset = 0x4, fixed_abs, tag = 'smem constant byte address 0x4 - core index']
  #allocation1 [shape = 'u32[144,128]{1,0:T(1,128)}', space=vmem, size = 0x12000, scoped, tag = 'internal scratch']
  #allocation2 [shape = 'f32[32,387]{1,0:T(8,128)}', space=vmem, size = 0x10000, scoped, tag = 'scratch operand']
  #allocation3 [shape = 'f32[96,256]{1,0:T(8,128)}', space=vmem, size = 0x18000, scoped, tag = 'scratch operand']
  %s0 = inlined_call_operand.vmem [shape: f32[2,32,1024], index: 0, kind: input, shape index: {}]
  %s1 = inlined_call_operand.vmem [shape: f32[2,4,32,6], index: 1, kind: input, shape index: {}]
  %s2 = inlined_call_operand.vmem [shape: f32[32,96], index: 2, kind: input, shape index: {}]
  %s3 = inlined_call_operand.vmem [shape: f32[32,1], index: 3, kind: input, shape index: {}]
  %s4 = inlined_call_operand.vmem [shape: f32[32,32], index: 4, kind: input, shape index: {}]
  %s5 = inlined_call_operand.vmem [shape: f32[32,1], index: 5, kind: input, shape index: {}]
  %s6 = inlined_call_operand.hbm [shape: f32[2,32,1024], index: 6, kind: output, shape index: {}]
  %s7 = sld [smem:[#allocation0]]
  $region80: #{dilated_unit.1} parent=0
    _
  %s9 = ssub.s32 1, %s7
  %s10 = scalar_select 0, %s9, %s7
  $region1: #{dilated_unit.1} parent=0
    #allocation4 [shape = 'u8[65536]{0}', space=vmem, size = 0x10000, scoped, tag = 'input window, operand 0']
    #allocation5 [shape = 'u8[65536]{0}', space=vmem, size = 0x10000, scoped, tag = 'output window, operand 0']
    #allocation6 [shape = 's32[2]{0}', space=sflag, size = 0x8, scoped, tag = 'scoped memory for dilated_unit.1']
    %11 = vsyncpa [#allocation6], 0
    %s12 = scalar_lea.sflag [#allocation6], 1
    %13 = vsyncpa %s12, 0
    loop: start=0, step=1, limit=10
    $region2: #{dilated_unit.1} parent=1 // loop_pre_header
      _
    $region3: #{dilated_unit.1} parent=1 // loop_header
      %s15 = sphi 0, %s19
      %p16 = scmp.ge.s32.totalorder %s15, 10
      %s22 = sphi 0, %s34
      %s23 = sphi 0, %s30
      %s24 = sphi 0, %s22
      %s25 = sphi 0, %s23
      %s26 = sphi 0, %s24
      %s27 = sphi 0, %s25
      %s39 = sphi 0, %s41
      %s42 = sphi 0, %s39
      %s43 = sphi 0, %s42
      %s59 = sphi 0, %s43
      %s67 = sphi 0, %s69
      %s70 = sphi 0, %s67
      %s71 = sphi 0, %s70
      %s87 = sphi 0, %s71
      %s91 = sphi 0, %s91
      %s93 = sphi 0, %s91
      %s94 = sphi 0, %s93
      %s108 = sphi 0, %s94
      %s112 = sphi 0, %s112
      %s114 = sphi 0, %s112
      %s115 = sphi 0, %s114
      %s129 = sphi 0, %s115
      %s133 = sphi 0, %s133
      %s135 = sphi 0, %s133
      %s136 = sphi 0, %s135
      %s150 = sphi 0, %s136
      %s154 = sphi 0, %s154
      %s156 = sphi 0, %s154
      %s157 = sphi 0, %s156
      %s171 = sphi 0, %s157
      %s179 = sphi 0, %s181
      %s182 = sphi 0, %s179
      %s183 = sphi 0, %s182
      %s199 = sphi 0, %s183
    $region4: #{dilated_unit.1} parent=1 // loop_header_branch
      %18 = sbr.rel (%p16) target = $region8
    $region5: #{dilated_unit.1} parent=1 // loop_body
      %s20 = ssub.s32 %s15, 1
      %s21 = ssub.s32 %s15, 2
      %s28 = sadd.s32 1, %s23
      %p29 = scmp.ge.s32.totalorder %s28, 4
      %s30 = scalar_select %p29, 0, %s28
      %s31 = sadd.s32 1, %s22
      %s32 = scalar_select %p29, %s31, %s22
      %p33 = scmp.ge.s32.totalorder %s32, 2
      %s34 = scalar_select %p33, 0, %s32
      %s35 = ssub.s32 %s22, %s34
      %s36 = ssub.s32 %s23, %s30
      %s37 = sor.u32 %s35, %s36
      %p38 = scmp.eq.s32.totalorder %s37, 0
      %s40 = sadd.s32 %s39, 1
      %s41 = scalar_select %p38, %s39, %s40
      %p44 = pneg %p38
      %p45 = scmp.eq.s32.totalorder %s15, 7
      %p46 = por %p44, %p45
      %p47 = scmp.ne.s32.totalorder %s39, %s42
      %p48 = scmp.eq.s32.totalorder %s15, 0
      %p49 = por %p47, %p48
      %p50 = scmp.ne.s32.totalorder %s39, %s42
      %p51 = scmp.eq.s32.totalorder %s20, 7
      %p52 = por %p50, %p51
      %p53 = scmp.ne.s32.totalorder %s42, %s43
      %p54 = scmp.eq.s32.totalorder %s20, 0
      %p55 = por %p53, %p54
      %p56 = scmp.ne.s32.totalorder %s42, %s43
      %p57 = scmp.eq.s32.totalorder %s21, 7
      %p58 = por %p56, %p57
      %p60 = scmp.ne.s32.totalorder %s43, %s59
      %p61 = scmp.eq.s32.totalorder %s21, 0
      %p62 = por %p60, %p61
      %s63 = ssub.s32 %s22, %s34
      %s64 = ssub.s32 %s23, %s30
      %s65 = sor.u32 %s63, %s64
      %p66 = scmp.eq.s32.totalorder %s65, 0
      %s68 = sadd.s32 %s67, 1
      %s69 = scalar_select %p66, %s67, %s68
      %p72 = pneg %p66
      %p73 = scmp.eq.s32.totalorder %s15, 7
      %p74 = por %p72, %p73
      %p75 = scmp.ne.s32.totalorder %s67, %s70
      %p76 = scmp.eq.s32.totalorder %s15, 0
      %p77 = por %p75, %p76
      %p78 = scmp.ne.s32.totalorder %s67, %s70
      %p79 = scmp.eq.s32.totalorder %s20, 7
      %p80 = por %p78, %p79
      %p81 = scmp.ne.s32.totalorder %s70, %s71
      %p82 = scmp.eq.s32.totalorder %s20, 0
      %p83 = por %p81, %p82
      %p84 = scmp.ne.s32.totalorder %s70, %s71
      %p85 = scmp.eq.s32.totalorder %s21, 7
      %p86 = por %p84, %p85
      %p88 = scmp.ne.s32.totalorder %s71, %s87
      %p89 = scmp.eq.s32.totalorder %s21, 0
      %p90 = por %p88, %p89
      %s92 = sadd.s32 %s91, 1
      %p95 = scmp.eq.s32.totalorder %s15, 7
      %p96 = scmp.ne.s32.totalorder %s91, %s93
      %p97 = scmp.eq.s32.totalorder %s15, 0
      %p98 = por %p96, %p97
      %p99 = scmp.ne.s32.totalorder %s91, %s93
      %p100 = scmp.eq.s32.totalorder %s20, 7
      %p101 = por %p99, %p100
      %p102 = scmp.ne.s32.totalorder %s93, %s94
      %p103 = scmp.eq.s32.totalorder %s20, 0
      %p104 = por %p102, %p103
      %p105 = scmp.ne.s32.totalorder %s93, %s94
      %p106 = scmp.eq.s32.totalorder %s21, 7
      %p107 = por %p105, %p106
      %p109 = scmp.ne.s32.totalorder %s94, %s108
      %p110 = scmp.eq.s32.totalorder %s21, 0
      %p111 = por %p109, %p110
      %s113 = sadd.s32 %s112, 1
      %p116 = scmp.eq.s32.totalorder %s15, 7
      %p117 = scmp.ne.s32.totalorder %s112, %s114
      %p118 = scmp.eq.s32.totalorder %s15, 0
      %p119 = por %p117, %p118
      %p120 = scmp.ne.s32.totalorder %s112, %s114
      %p121 = scmp.eq.s32.totalorder %s20, 7
      %p122 = por %p120, %p121
      %p123 = scmp.ne.s32.totalorder %s114, %s115
      %p124 = scmp.eq.s32.totalorder %s20, 0
      %p125 = por %p123, %p124
      %p126 = scmp.ne.s32.totalorder %s114, %s115
      %p127 = scmp.eq.s32.totalorder %s21, 7
      %p128 = por %p126, %p127
      %p130 = scmp.ne.s32.totalorder %s115, %s129
      %p131 = scmp.eq.s32.totalorder %s21, 0
      %p132 = por %p130, %p131
      %s134 = sadd.s32 %s133, 1
      %p137 = scmp.eq.s32.totalorder %s15, 7
      %p138 = scmp.ne.s32.totalorder %s133, %s135
      %p139 = scmp.eq.s32.totalorder %s15, 0
      %p140 = por %p138, %p139
      %p141 = scmp.ne.s32.totalorder %s133, %s135
      %p142 = scmp.eq.s32.totalorder %s20, 7
      %p143 = por %p141, %p142
      %p144 = scmp.ne.s32.totalorder %s135, %s136
      %p145 = scmp.eq.s32.totalorder %s20, 0
      %p146 = por %p144, %p145
      %p147 = scmp.ne.s32.totalorder %s135, %s136
      %p148 = scmp.eq.s32.totalorder %s21, 7
      %p149 = por %p147, %p148
      %p151 = scmp.ne.s32.totalorder %s136, %s150
      %p152 = scmp.eq.s32.totalorder %s21, 0
      %p153 = por %p151, %p152
      %s155 = sadd.s32 %s154, 1
      %p158 = scmp.eq.s32.totalorder %s15, 7
      %p159 = scmp.ne.s32.totalorder %s154, %s156
      %p160 = scmp.eq.s32.totalorder %s15, 0
      %p161 = por %p159, %p160
      %p162 = scmp.ne.s32.totalorder %s154, %s156
      %p163 = scmp.eq.s32.totalorder %s20, 7
      %p164 = por %p162, %p163
      %p165 = scmp.ne.s32.totalorder %s156, %s157
      %p166 = scmp.eq.s32.totalorder %s20, 0
      %p167 = por %p165, %p166
      %p168 = scmp.ne.s32.totalorder %s156, %s157
      %p169 = scmp.eq.s32.totalorder %s21, 7
      %p170 = por %p168, %p169
      %p172 = scmp.ne.s32.totalorder %s157, %s171
      %p173 = scmp.eq.s32.totalorder %s21, 0
      %p174 = por %p172, %p173
      %s175 = ssub.s32 %s22, %s34
      %s176 = ssub.s32 %s23, %s30
      %s177 = sor.u32 %s175, %s176
      %p178 = scmp.eq.s32.totalorder %s177, 0
      %s180 = sadd.s32 %s179, 1
      %s181 = scalar_select %p178, %s179, %s180
      %p184 = pneg %p178
      %p185 = scmp.eq.s32.totalorder %s15, 7
      %p186 = por %p184, %p185
      %p187 = scmp.ne.s32.totalorder %s179, %s182
      %p188 = scmp.eq.s32.totalorder %s15, 0
      %p189 = por %p187, %p188
      %p190 = scmp.ne.s32.totalorder %s179, %s182
      %p191 = scmp.eq.s32.totalorder %s20, 7
      %p192 = por %p190, %p191
      %p193 = scmp.ne.s32.totalorder %s182, %s183
      %p194 = scmp.eq.s32.totalorder %s20, 0
      %p195 = por %p193, %p194
      %p196 = scmp.ne.s32.totalorder %s182, %s183
      %p197 = scmp.eq.s32.totalorder %s21, 7
      %p198 = por %p196, %p197
      %p200 = scmp.ne.s32.totalorder %s183, %s199
      %p201 = scmp.eq.s32.totalorder %s21, 0
      %p202 = por %p200, %p201
      %p203 = scmp.le.s32.totalorder 1, %s15
      %p204 = scmp.lt.s32.totalorder %s15, 9
      %p205 = pnand %p203, %p204
      %p206 = pneg %p205
      // Predicated region
      $region9: #{dilated_unit.1} parent=5 // pred_check
        _
      $region10: #{dilated_unit.1} parent=5 // pred_check_branch
        %208 = sbr.rel (%p205) target = $region12
      $region11: #{dilated_unit.1} parent=5 // pred_region
        %s209 = ssub.s32 %s15, 1
        // Predicated region
        $region13: #{dilated_unit.1} parent=11 // pred_check
          %p210 = pneg %p104
        $region14: #{dilated_unit.1} parent=11 // pred_check_branch
          %212 = sbr.rel (%p210) target = $region16
        $region15: #{dilated_unit.1} parent=11 // pred_region
          _
        $region16: #{dilated_unit.1} parent=11 // pred_fallthru
          _
        // Predicated region
        $region17: #{dilated_unit.1} parent=11 // pred_check
          %p213 = pneg %p125
        $region18: #{dilated_unit.1} parent=11 // pred_check_branch
          %215 = sbr.rel (%p213) target = $region20
        $region19: #{dilated_unit.1} parent=11 // pred_region
          _
        $region20: #{dilated_unit.1} parent=11 // pred_fallthru
          _
        // Predicated region
        $region21: #{dilated_unit.1} parent=11 // pred_check
          %p216 = pneg %p146
        $region22: #{dilated_unit.1} parent=11 // pred_check_branch
          %218 = sbr.rel (%p216) target = $region24
        $region23: #{dilated_unit.1} parent=11 // pred_region
          _
        $region24: #{dilated_unit.1} parent=11 // pred_fallthru
          _
        // Predicated region
        $region25: #{dilated_unit.1} parent=11 // pred_check
          %p219 = pneg %p167
        $region26: #{dilated_unit.1} parent=11 // pred_check_branch
          %221 = sbr.rel (%p219) target = $region28
        $region27: #{dilated_unit.1} parent=11 // pred_region
          _
        $region28: #{dilated_unit.1} parent=11 // pred_fallthru
          _
      $region12: #{dilated_unit.1} parent=5 // pred_fallthru
        _
      %p222 = scmp.lt.s32.totalorder %s15, 8
      // Predicated region
      $region29: #{dilated_unit.1} parent=5 // pred_check
        %p223 = pneg %p222
      $region30: #{dilated_unit.1} parent=5 // pred_check_branch
        %225 = sbr.rel (%p223) target = $region32
      $region31: #{dilated_unit.1} parent=5 // pred_region
        // Predicated region
        $region33: #{dilated_unit.1} parent=31 // pred_check
          %p226 = pneg %p49
        $region34: #{dilated_unit.1} parent=31 // pred_check_branch
          %228 = sbr.rel (%p226) target = $region36
        $region35: #{dilated_unit.1} parent=31 // pred_region
          %s229 = sand.u32 %s39, 1
          %s230 = sand.u32 %s39, 1
          %s231 = smul.addr %s230, 64
          %s232 = scalar_lea.vmem [#allocation4], %s231
          %s233 = smul.u32 2, %s23
          %s234 = smul.addr %s22, 32
          %s235 = sadd.s32 %s233, %s234
          %s236 = smul.addr %s235, 8
          %s237 = scalar_lea.vmem %s0, %s236
          // Predicated region
          $region37: #{dilated_unit.1} parent=35 // pred_check
            _
          $region38: #{dilated_unit.1} parent=35 // pred_check_branch
            %239 = sbr.rel (0) target = $region40
          $region39: #{dilated_unit.1} parent=35 // pred_region
            // Predicated region
            $region41: #{dilated_unit.1} parent=39 // pred_check
              _
            $region42: #{dilated_unit.1} parent=39 // pred_check_branch
              %241 = sbr.rel (0) target = $region44
            $region43: #{dilated_unit.1} parent=39 // pred_region
              loop: start=0, step=1, limit=1
              $region45: #{dilated_unit.1} parent=43 // loop_pre_header
                _
              $region46: #{dilated_unit.1} parent=43 // loop_header
                %s243 = sphi 0, %s247
                %p244 = scmp.ge.s32.totalorder %s243, 1
                %s248 = sphi %s237, %s237
                %s249 = sphi %s232, %s232
              $region47: #{dilated_unit.1} parent=43 // loop_header_branch
                %246 = sbr.rel (%p244) target = $region51
              $region48: #{dilated_unit.1} parent=43 // loop_body
                %v250 = vld [vmem:[%s248] sm:$0xff]
                %251 = vst [vmem:[%s249] sm:$0xff] %v250
                %v252 = vld [vmem:[%s248 + $0x8] sm:$0xff]
                %253 = vst [vmem:[%s249 + $0x8] sm:$0xff] %v252
                %v254 = vld [vmem:[%s248 + $0x40] sm:$0xff]
                %255 = vst [vmem:[%s249 + $0x10] sm:$0xff] %v254
                %v256 = vld [vmem:[%s248 + $0x48] sm:$0xff]
                %257 = vst [vmem:[%s249 + $0x18] sm:$0xff] %v256
                %v258 = vld [vmem:[%s248 + $0x80] sm:$0xff]
                %259 = vst [vmem:[%s249 + $0x20] sm:$0xff] %v258
                %v260 = vld [vmem:[%s248 + $0x88] sm:$0xff]
                %261 = vst [vmem:[%s249 + $0x28] sm:$0xff] %v260
                %v262 = vld [vmem:[%s248 + $0xc0] sm:$0xff]
                %263 = vst [vmem:[%s249 + $0x30] sm:$0xff] %v262
                %v264 = vld [vmem:[%s248 + $0xc8] sm:$0xff]
                %265 = vst [vmem:[%s249 + $0x38] sm:$0xff] %v264
              $region49: #{dilated_unit.1} parent=43 // loop_footer
                %s247 = sadd.s32 1, %s243
              $region50: #{dilated_unit.1} parent=43 // loop_footer_branch
                %242 = sbr.rel target = $region46
              $region51: #{dilated_unit.1} parent=43 // loop_exit
                _
            $region44: #{dilated_unit.1} parent=39 // pred_fallthru
              _
            // Predicated region
            $region52: #{dilated_unit.1} parent=39 // pred_check
              _
            $region53: #{dilated_unit.1} parent=39 // pred_check_branch
              %267 = sbr.rel target = $region55
            $region54: #{dilated_unit.1} parent=39 // pred_region
              _
            $region55: #{dilated_unit.1} parent=39 // pred_fallthru
              _
          $region40: #{dilated_unit.1} parent=35 // pred_fallthru
            _
          %268 = vnop
        $region36: #{dilated_unit.1} parent=31 // pred_fallthru
          _
        // Predicated region
        $region56: #{dilated_unit.1} parent=31 // pred_check
          %p269 = pneg %p77
        $region57: #{dilated_unit.1} parent=31 // pred_check_branch
          %271 = sbr.rel (%p269) target = $region59
        $region58: #{dilated_unit.1} parent=31 // pred_region
          %p272 = scmp.lt.s32.totalorder %s22, 1
          %s273 = scalar_select %p272, %s22, 1
          %p274 = scmp.lt.s32.totalorder %s23, 3
          %s275 = scalar_select %p274, %s23, 3
          %s276 = smul.addr %s275, 4
          %s277 = smul.addr %s273, 16
          %s278 = sadd.s32 %s276, %s277
          %s279 = smul.addr %s278, 8
          %s280 = scalar_lea.vmem %s1, %s279
        $region59: #{dilated_unit.1} parent=31 // pred_fallthru
          _
      $region32: #{dilated_unit.1} parent=5 // pred_fallthru
        _
      %p281 = scmp.le.s32.totalorder 1, %s15
      %p282 = scmp.lt.s32.totalorder %s15, 9
      %p283 = pnand %p281, %p282
      %p284 = pneg %p283
      // Predicated region
      $region60: #{dilated_unit.1} parent=5 // pred_check
        _
      $region61: #{dilated_unit.1} parent=5 // pred_check_branch
        %286 = sbr.rel (%p283) target = $region63
      $region62: #{dilated_unit.1} parent=5 // pred_region
        %s287 = ssub.s32 %s15, 1
        %s288 = sand.u32 %s42, 1
        %s289 = sand.u32 %s42, 1
        %s290 = smul.addr %s289, 64
        %s291 = scalar_lea.vmem [#allocation4], %s290
        // Predicated region
        $region64: #{dilated_unit.1} parent=62 // pred_check
          %p292 = pneg %p55
        $region65: #{dilated_unit.1} parent=62 // pred_check_branch
          %294 = sbr.rel (%p292) target = $region67
        $region66: #{dilated_unit.1} parent=62 // pred_region
          _
        $region67: #{dilated_unit.1} parent=62 // pred_fallthru
          _
        %s295 = sand.u32 %s42, 1
        %s296 = sand.u32 %s42, 1
        %s297 = smul.addr %s296, 64
        %s298 = scalar_lea.vmem [#allocation4], %s297
        %p299 = pneg %p55
        %p300 = pneg %p52
        %p301 = scmp.lt.s32.totalorder %s24, 1
        %s302 = scalar_select %p301, %s24, 1
        %p303 = scmp.lt.s32.totalorder %s25, 3
        %s304 = scalar_select %p303, %s25, 3
        %s305 = smul.addr %s304, 4
        %s306 = smul.addr %s302, 16
        %s307 = sadd.s32 %s305, %s306
        %s308 = smul.addr %s307, 8
        %s309 = scalar_lea.vmem %s1, %s308
        %p310 = pneg %p83
        %p311 = pneg %p80
        %p312 = pneg %p104
        %p313 = pneg %p101
        %p314 = pneg %p125
        %p315 = pneg %p122
        %p316 = pneg %p146
        %p317 = pneg %p143
        %p318 = pneg %p167
        %p319 = pneg %p164
        %p320 = pneg %p195
        %p321 = pneg %p192
        %s322 = sand.u32 %s182, 1
        %s323 = scalar_lea.sflag [#allocation6], %s322
        %s324 = sand.u32 %s182, 1
        %s325 = smul.addr %s324, 64
        %s326 = scalar_lea.vmem [#allocation5], %s325
        %s327 = smul.u32 2, %s25
        %p328 = scmp.lt.s32.totalorder %s24, 1
        %s329 = scalar_select %p328, %s24, 1
        %p330 = scmp.lt.s32.totalorder %s25, 3
        %s331 = scalar_select %p330, %s25, 3
        %s332 = smul.addr %s331, 4
        %s333 = smul.addr %s329, 16
        %s334 = sadd.s32 %s332, %s333
        %s335 = smul.addr %s334, 8
        %s336 = scalar_lea.vmem %s1, %s335
        %s337 = smul.u32 2, %s25
        %v338 = vld [vmem:[%s291] sm:$0xff]
        %v339 = vld [vmem:[%s291 + $0x8] sm:$0xff]
        %v340 = vld [vmem:[%s291 + $0x10] sm:$0xff]
        %v341 = vld [vmem:[%s291 + $0x18] sm:$0xff]
        %v342 = vld [vmem:[%s291 + $0x20] sm:$0xff]
        %v343 = vld [vmem:[%s291 + $0x28] sm:$0xff]
        %v344 = vld [vmem:[%s291 + $0x30] sm:$0xff]
        %v345 = vld [vmem:[%s291 + $0x38] sm:$0xff]
        %vm346 = vcmp.gt.f32.partialorder %v338, 0.0
        %vm347 = vcmp.gt.f32.partialorder %v339, 0.0
        %vm348 = vcmp.gt.f32.partialorder %v340, 0.0
        %vm349 = vcmp.gt.f32.partialorder %v341, 0.0
        %vm350 = vcmp.gt.f32.partialorder %v342, 0.0
        %vm351 = vcmp.gt.f32.partialorder %v343, 0.0
        %vm352 = vcmp.gt.f32.partialorder %v344, 0.0
        %vm353 = vcmp.gt.f32.partialorder %v345, 0.0
        %v354 = vmul.f32 %v338, 0.2
        %v355 = vmul.f32 %v339, 0.2
        %v356 = vmul.f32 %v340, 0.2
        %v357 = vmul.f32 %v341, 0.2
        %v358 = vmul.f32 %v342, 0.2
        %v359 = vmul.f32 %v343, 0.2
        %v360 = vmul.f32 %v344, 0.2
        %v361 = vmul.f32 %v345, 0.2
        %v362 = vsel %vm346, %v338, %v354
        %v363 = vsel %vm347, %v339, %v355
        %v364 = vsel %vm348, %v340, %v356
        %v365 = vsel %vm349, %v341, %v357
        %v366 = vsel %vm350, %v342, %v358
        %v367 = vsel %vm351, %v343, %v359
        %v368 = vsel %vm352, %v344, %v360
        %v369 = vsel %vm353, %v345, %v361
        %370 = vst [vmem:[#allocation2 + $0x8] sm:$0xff] %v362
        %371 = vst [vmem:[#allocation2 + $0x10] sm:$0xff] %v363
        %372 = vst [vmem:[#allocation2 + $0x28] sm:$0xff] %v364
        %373 = vst [vmem:[#allocation2 + $0x30] sm:$0xff] %v365
        %374 = vst [vmem:[#allocation2 + $0x48] sm:$0xff] %v366
        %375 = vst [vmem:[#allocation2 + $0x50] sm:$0xff] %v367
        %376 = vst [vmem:[#allocation2 + $0x68] sm:$0xff] %v368
        %377 = vst [vmem:[#allocation2 + $0x70] sm:$0xff] %v369
        %v378 = vld [vmem:[%s336] sm:$0xff]
        %v379 = vld [vmem:[%s336 + $0x8] sm:$0xff]
        %v380 = vld [vmem:[%s336 + $0x10] sm:$0xff]
        %v381 = vld [vmem:[%s336 + $0x18] sm:$0xff]
        %vm382 = vcmp.gt.f32.partialorder %v378, 0.0
        %vm383 = vcmp.gt.f32.partialorder %v379, 0.0
        %vm384 = vcmp.gt.f32.partialorder %v380, 0.0
        %vm385 = vcmp.gt.f32.partialorder %v381, 0.0
        %v386 = vmul.f32 %v378, 0.2
        %v387 = vmul.f32 %v379, 0.2
        %v388 = vmul.f32 %v380, 0.2
        %v389 = vmul.f32 %v381, 0.2
        %v390 = vsel %vm382, %v378, %v386
        %v391 = vsel %vm383, %v379, %v387
        %v392 = vsel %vm384, %v380, %v388
        %v393 = vsel %vm385, %v381, %v389
        %398 = vrot.lane.b32.xlu0 %v390, 125
        %v399 = vpop.permute.xlu0 %398
        %400 = vrot.lane.b32.xlu0 %v391, 125
        %v401 = vpop.permute.xlu0 %400
        %402 = vrot.lane.b32.xlu0 %v392, 125
        %v403 = vpop.permute.xlu0 %402
        %404 = vrot.lane.b32.xlu0 %v393, 125
        %v405 = vpop.permute.xlu0 %404
        %vm410 = vcmask 1048552
        %411 = vst.msk [vmem:[#allocation2] sm:$0xff] %vm410, %v399
        %412 = vst.msk [vmem:[#allocation2 + $0x20] sm:$0xff] %vm410, %v401
        %413 = vst.msk [vmem:[#allocation2 + $0x40] sm:$0xff] %vm410, %v403
        %414 = vst.msk [vmem:[#allocation2 + $0x60] sm:$0xff] %vm410, %v405
        %vm415 = vcmask 23552
        %416 = vst.msk [vmem:[#allocation2 + $0x18] sm:$0xff] %vm415, %v399
        %417 = vst.msk [vmem:[#allocation2 + $0x38] sm:$0xff] %vm415, %v401
        %418 = vst.msk [vmem:[#allocation2 + $0x58] sm:$0xff] %vm415, %v403
        %419 = vst.msk [vmem:[#allocation2 + $0x78] sm:$0xff] %vm415, %v405
        %v420 = vld [vmem:[#allocation2] sm:$0xff]
        %v421 = vld [vmem:[#allocation2 + $0x8] sm:$0xff]
        %v422 = vld [vmem:[#allocation2 + $0x10] sm:$0xff]
        %v423 = vld [vmem:[#allocation2 + $0x20] sm:$0xff]
        %v424 = vld [vmem:[#allocation2 + $0x28] sm:$0xff]
        %v425 = vld [vmem:[#allocation2 + $0x30] sm:$0xff]
        %v426 = vld [vmem:[#allocation2 + $0x40] sm:$0xff]
        %v427 = vld [vmem:[#allocation2 + $0x48] sm:$0xff]
        %v428 = vld [vmem:[#allocation2 + $0x50] sm:$0xff]
        %v429 = vld [vmem:[#allocation2 + $0x60] sm:$0xff]
        %v430 = vld [vmem:[#allocation2 + $0x68] sm:$0xff]
        %v431 = vld [vmem:[#allocation2 + $0x70] sm:$0xff]
        %444 = vrot.lane.b32.xlu0 %v420, 3
        %v445 = vpop.permute.xlu0 %444
        %446 = vrot.lane.b32.xlu0 %v421, 3
        %v447 = vpop.permute.xlu0 %446
        %448 = vrot.lane.b32.xlu0 %v422, 3
        %v449 = vpop.permute.xlu0 %448
        %450 = vrot.lane.b32.xlu0 %v423, 3
        %v451 = vpop.permute.xlu0 %450
        %452 = vrot.lane.b32.xlu0 %v424, 3
        %v453 = vpop.permute.xlu0 %452
        %454 = vrot.lane.b32.xlu0 %v425, 3
        %v455 = vpop.permute.xlu0 %454
        %456 = vrot.lane.b32.xlu0 %v426, 3
        %v457 = vpop.permute.xlu0 %456
        %458 = vrot.lane.b32.xlu0 %v427, 3
        %v459 = vpop.permute.xlu0 %458
        %460 = vrot.lane.b32.xlu0 %v428, 3
        %v461 = vpop.permute.xlu0 %460
        %462 = vrot.lane.b32.xlu0 %v429, 3
        %v463 = vpop.permute.xlu0 %462
        %464 = vrot.lane.b32.xlu0 %v430, 3
        %v465 = vpop.permute.xlu0 %464
        %466 = vrot.lane.b32.xlu0 %v431, 3
        %v467 = vpop.permute.xlu0 %466
        %v468 = vsel %vm415, %v445, %v447
        %v469 = vsel %vm415, %v447, %v449
        %v470 = vsel %vm415, %v451, %v453
        %v471 = vsel %vm415, %v453, %v455
        %v472 = vsel %vm415, %v457, %v459
        %v473 = vsel %vm415, %v459, %v461
        %v474 = vsel %vm415, %v463, %v465
        %v475 = vsel %vm415, %v465, %v467
        %484 = vst [vmem:[#allocation3] sm:$0xff] %v468
        %485 = vst [vmem:[#allocation3 + $0x8] sm:$0xff] %v469
        %486 = vst [vmem:[#allocation3 + $0x10] sm:$0xff] %v470
        %487 = vst [vmem:[#allocation3 + $0x18] sm:$0xff] %v471
        %488 = vst [vmem:[#allocation3 + $0x20] sm:$0xff] %v472
        %489 = vst [vmem:[#allocation3 + $0x28] sm:$0xff] %v473
        %490 = vst [vmem:[#allocation3 + $0x30] sm:$0xff] %v474
        %491 = vst [vmem:[#allocation3 + $0x38] sm:$0xff] %v475
        %v492 = vld [vmem:[#allocation2 + $0x8] sm:$0xff]
        %v493 = vld [vmem:[#allocation2 + $0x10] sm:$0xff]
        %v494 = vld [vmem:[#allocation2 + $0x28] sm:$0xff]
        %v495 = vld [vmem:[#allocation2 + $0x30] sm:$0xff]
        %v496 = vld [vmem:[#allocation2 + $0x48] sm:$0xff]
        %v497 = vld [vmem:[#allocation2 + $0x50] sm:$0xff]
        %v498 = vld [vmem:[#allocation2 + $0x68] sm:$0xff]
        %v499 = vld [vmem:[#allocation2 + $0x70] sm:$0xff]
        %500 = vst [vmem:[#allocation3 + $0x40] sm:$0xff] %v492
        %501 = vst [vmem:[#allocation3 + $0x48] sm:$0xff] %v493
        %502 = vst [vmem:[#allocation3 + $0x50] sm:$0xff] %v494
        %503 = vst [vmem:[#allocation3 + $0x58] sm:$0xff] %v495
        %504 = vst [vmem:[#allocation3 + $0x60] sm:$0xff] %v496
        %505 = vst [vmem:[#allocation3 + $0x68] sm:$0xff] %v497
        %506 = vst [vmem:[#allocation3 + $0x70] sm:$0xff] %v498
        %507 = vst [vmem:[#allocation3 + $0x78] sm:$0xff] %v499
        %v508 = vld [vmem:[#allocation2 + $0x8] sm:$0xff]
        %v509 = vld [vmem:[#allocation2 + $0x10] sm:$0xff]
        %v510 = vld [vmem:[#allocation2 + $0x18] sm:$0xff]
        %v511 = vld [vmem:[#allocation2 + $0x28] sm:$0xff]
        %v512 = vld [vmem:[#allocation2 + $0x30] sm:$0xff]
        %v513 = vld [vmem:[#allocation2 + $0x38] sm:$0xff]
        %v514 = vld [vmem:[#allocation2 + $0x48] sm:$0xff]
        %v515 = vld [vmem:[#allocation2 + $0x50] sm:$0xff]
        %v516 = vld [vmem:[#allocation2 + $0x58] sm:$0xff]
        %v517 = vld [vmem:[#allocation2 + $0x68] sm:$0xff]
        %v518 = vld [vmem:[#allocation2 + $0x70] sm:$0xff]
        %v519 = vld [vmem:[#allocation2 + $0x78] sm:$0xff]
        %532 = vrot.lane.b32.xlu0 %v508, 125
        %v533 = vpop.permute.xlu0 %532
        %534 = vrot.lane.b32.xlu0 %v509, 125
        %v535 = vpop.permute.xlu0 %534
        %536 = vrot.lane.b32.xlu0 %v510, 125
        %v537 = vpop.permute.xlu0 %536
        %538 = vrot.lane.b32.xlu0 %v511, 125
        %v539 = vpop.permute.xlu0 %538
        %540 = vrot.lane.b32.xlu0 %v512, 125
        %v541 = vpop.permute.xlu0 %540
        %542 = vrot.lane.b32.xlu0 %v513, 125
        %v543 = vpop.permute.xlu0 %542
        %544 = vrot.lane.b32.xlu0 %v514, 125
        %v545 = vpop.permute.xlu0 %544
        %546 = vrot.lane.b32.xlu0 %v515, 125
        %v547 = vpop.permute.xlu0 %546
        %548 = vrot.lane.b32.xlu0 %v516, 125
        %v549 = vpop.permute.xlu0 %548
        %550 = vrot.lane.b32.xlu0 %v517, 125
        %v551 = vpop.permute.xlu0 %550
        %552 = vrot.lane.b32.xlu0 %v518, 125
        %v553 = vpop.permute.xlu0 %552
        %554 = vrot.lane.b32.xlu0 %v519, 125
        %v555 = vpop.permute.xlu0 %554
        %vm556 = vcmask 1022976
        %v557 = vsel %vm556, %v533, %v535
        %v558 = vsel %vm556, %v535, %v537
        %v559 = vsel %vm556, %v539, %v541
        %v560 = vsel %vm556, %v541, %v543
        %v561 = vsel %vm556, %v545, %v547
        %v562 = vsel %vm556, %v547, %v549
        %v563 = vsel %vm556, %v551, %v553
        %v564 = vsel %vm556, %v553, %v555
        %573 = vst [vmem:[#allocation3 + $0x80] sm:$0xff] %v557
        %574 = vst [vmem:[#allocation3 + $0x88] sm:$0xff] %v558
        %575 = vst [vmem:[#allocation3 + $0x90] sm:$0xff] %v559
        %576 = vst [vmem:[#allocation3 + $0x98] sm:$0xff] %v560
        %577 = vst [vmem:[#allocation3 + $0xa0] sm:$0xff] %v561
        %578 = vst [vmem:[#allocation3 + $0xa8] sm:$0xff] %v562
        %579 = vst [vmem:[#allocation3 + $0xb0] sm:$0xff] %v563
        %580 = vst [vmem:[#allocation3 + $0xb8] sm:$0xff] %v564
        %v581 = vld [vmem:[%s2] sm:$0xff]
        %v582 = vld [vmem:[%s2 + $0x8] sm:$0xff]
        %v583 = vld [vmem:[%s2 + $0x10] sm:$0xff]
        %v584 = vld [vmem:[%s2 + $0x18] sm:$0xff]
        %v585 = vld [vmem:[#allocation3] sm:$0xff]
        %v586 = vld [vmem:[#allocation3 + $0x8] sm:$0xff]
        %v587 = vld [vmem:[#allocation3 + $0x10] sm:$0xff]
        %v588 = vld [vmem:[#allocation3 + $0x18] sm:$0xff]
        %v589 = vld [vmem:[#allocation3 + $0x20] sm:$0xff]
        %v590 = vld [vmem:[#allocation3 + $0x28] sm:$0xff]
        %v591 = vld [vmem:[#allocation3 + $0x30] sm:$0xff]
        %v592 = vld [vmem:[#allocation3 + $0x38] sm:$0xff]
        %v593 = vld [vmem:[#allocation3 + $0x40] sm:$0xff]
        %v594 = vld [vmem:[#allocation3 + $0x48] sm:$0xff]
        %v595 = vld [vmem:[#allocation3 + $0x50] sm:$0xff]
        %v596 = vld [vmem:[#allocation3 + $0x58] sm:$0xff]
        %v597 = vld [vmem:[#allocation3 + $0x60] sm:$0xff]
        %v598 = vld [vmem:[#allocation3 + $0x68] sm:$0xff]
        %v599 = vld [vmem:[#allocation3 + $0x70] sm:$0xff]
        %v600 = vld [vmem:[#allocation3 + $0x78] sm:$0xff]
        %v601 = vld [vmem:[#allocation3 + $0x80] sm:$0xff]
        %v602 = vld [vmem:[#allocation3 + $0x88] sm:$0xff]
        %v603 = vld [vmem:[#allocation3 + $0x90] sm:$0xff]
        %v604 = vld [vmem:[#allocation3 + $0x98] sm:$0xff]
        %v605 = vld [vmem:[#allocation3 + $0xa0] sm:$0xff]
        %v606 = vld [vmem:[#allocation3 + $0xa8] sm:$0xff]
        %v607 = vld [vmem:[#allocation3 + $0xb0] sm:$0xff]
        %v608 = vld [vmem:[#allocation3 + $0xb8] sm:$0xff]
        %v609 = vld [vmem:[%s3] sm:$0xff]
        %v610 = vld [vmem:[%s3 + $0x8] sm:$0xff]
        %v611 = vld [vmem:[%s3 + $0x10] sm:$0xff]
        %v612 = vld [vmem:[%s3 + $0x18] sm:$0xff]
        %614 = vset.pattern.permute.xlu0 0
        %615 = vperm.xlu0 %614, %v609
        %v616 = vpop.permute.xlu0 %615
        %619 = vset.pattern.permute.xlu0 0
        %620 = vperm.xlu0 %619, %v610
        %v621 = vpop.permute.xlu0 %620
        %624 = vset.pattern.permute.xlu0 0
        %625 = vperm.xlu0 %624, %v611
        %v626 = vpop.permute.xlu0 %625
        %629 = vset.pattern.permute.xlu0 0
        %630 = vperm.xlu0 %629, %v612
        %v631 = vpop.permute.xlu0 %630
        %vm633 = vcmask 785408
        %v635 = vsel %vm633, %v581, 0
        %v638 = vsel %vm633, %v582, 0
        %v641 = vsel %vm633, %v583, 0
        %v644 = vsel %vm633, %v584, 0
        %646 = vmatprep.subr.mxu0 0.0
        %647 = vmatpush1.msra.mxu0 0.0
        %648 = vmatprep.subr.mxu0 0.0
        %649 = vmatpush1.msra.mxu0 0.0
        %650 = vmatprep.subr.mxu0 0.0
        %651 = vmatpush1.msra.mxu0 0.0
        %652 = vmatprep.subr.mxu0 0.0
        %653 = vmatpush1.msra.mxu0 0.0
        %654 = vmatprep.subr.mxu0 %v608
        %655 = vmatpush1.msra.mxu0 %v607
        %656 = vmatprep.subr.mxu0 %v606
        %657 = vmatpush1.msra.mxu0 %v605
        %658 = vmatprep.subr.mxu0 %v604
        %659 = vmatpush1.msra.mxu0 %v603
        %660 = vmatprep.subr.mxu0 %v602
        %661 = vmatpush1.msra.mxu0 %v601
        %662 = vmatprep.subr.mxu0 %v600
        %663 = vmatpush1.msra.mxu0 %v599
        %664 = vmatprep.subr.mxu0 %v598
        %665 = vmatpush1.msra.mxu0 %v597
        %666 = vmatprep.subr.mxu0 %v596
        %667 = vmatpush1.msra.mxu0 %v595
        %668 = vmatprep.subr.mxu0 %v594
        %669 = vmatpush1.msra.mxu0 %v593
        %670 = vmatprep.subr.mxu0 %v592
        %671 = vmatpush1.msra.mxu0 %v591
        %672 = vmatprep.subr.mxu0 %v590
        %673 = vmatpush1.msra.mxu0 %v589
        %674 = vmatprep.subr.mxu0 %v588
        %675 = vmatpush1.msra.mxu0 %v587
        %676 = vmatprep.subr.mxu0 %v586
        %677 = vmatpush1.msra.mxu0 %v585
        %678 = vmatprep.subr.mxu0 0.0
        %679 = vmatpush2.msra.mxu0 0.0
        %680 = vmatprep.subr.mxu0 0.0
        %681 = vmatpush2.msra.mxu0 0.0
        %682 = vmatprep.subr.mxu0 0.0
        %683 = vmatpush2.msra.mxu0 0.0
        %684 = vmatprep.subr.mxu0 0.0
        %685 = vmatpush2.msra.mxu0 0.0
        %686 = vmatprep.subr.mxu0 0.0
        %687 = vmatpush2.msra.mxu0 0.0
        %688 = vmatprep.subr.mxu0 0.0
        %689 = vmatpush2.msra.mxu0 0.0
        %690 = vmatprep.subr.mxu0 0.0
        %691 = vmatpush2.msra.mxu0 0.0
        %692 = vmatprep.subr.mxu0 0.0
        %693 = vmatpush2.msra.mxu0 0.0
        %694 = vmatprep.subr.mxu0 0.0
        %695 = vmatpush2.msra.mxu0 0.0
        %696 = vmatprep.subr.mxu0 0.0
        %697 = vmatpush2.msra.mxu0 0.0
        %698 = vmatprep.subr.mxu0 0.0
        %699 = vmatpush2.msra.mxu0 0.0
        %700 = vmatprep.subr.mxu0 0.0
        %701 = vmatpush2.msra.mxu0 0.0
        %702 = vmatprep.subr.mxu0 0.0
        %703 = vmatpush2.msra.mxu0 0.0
        %704 = vmatprep.subr.mxu0 0.0
        %705 = vmatpush2.msra.mxu0 0.0
        %706 = vmatprep.subr.mxu0 0.0
        %707 = vmatpush2.msra.mxu0 0.0
        %708 = vmatprep.subr.mxu0 0.0
        %709 = vmatpush2.msra.mxu0 0.0
        %710 = vmatprep.mubr.f32.mxu0 0.0
        %711 = vmatmul.mubr.f32.gmra.mxu0 %v635
        %v712 = vpop.f32.mrf.mxu0
        %v713 = vadd.f32 %v616, %v712
        %v714 = vpop.f32.mrf.mxu0
        %v715 = vadd.f32 %v616, %v714
        %716 = vmatprep.mubr.f32.mxu0 0.0
        %717 = vmatmul.mubr.f32.gmra.mxu0 %v638
        %v718 = vpop.f32.mrf.mxu0
        %v719 = vadd.f32 %v621, %v718
        %v720 = vpop.f32.mrf.mxu0
        %v721 = vadd.f32 %v621, %v720
        %722 = vmatprep.mubr.f32.mxu0 0.0
        %723 = vmatmul.mubr.f32.gmra.mxu0 %v641
        %v724 = vpop.f32.mrf.mxu0
        %v725 = vadd.f32 %v626, %v724
        %v726 = vpop.f32.mrf.mxu0
        %v727 = vadd.f32 %v626, %v726
        %728 = vmatprep.mubr.f32.mxu0 0.0
        %729 = vmatmul.mubr.f32.gmra.mxu0 %v644
        %v730 = vpop.f32.mrf.mxu0
        %v731 = vadd.f32 %v631, %v730
        %v732 = vpop.f32.mrf.mxu0
        %v733 = vadd.f32 %v631, %v732
        %734 = vdwg.mxu0
        %vm735 = vcmp.gt.f32.partialorder %v713, 0.0
        %vm736 = vcmp.gt.f32.partialorder %v715, 0.0
        %vm737 = vcmp.gt.f32.partialorder %v719, 0.0
        %vm738 = vcmp.gt.f32.partialorder %v721, 0.0
        %vm739 = vcmp.gt.f32.partialorder %v725, 0.0
        %vm740 = vcmp.gt.f32.partialorder %v727, 0.0
        %vm741 = vcmp.gt.f32.partialorder %v731, 0.0
        %vm742 = vcmp.gt.f32.partialorder %v733, 0.0
        %v743 = vmul.f32 %v713, 0.2
        %v744 = vmul.f32 %v715, 0.2
        %v745 = vmul.f32 %v719, 0.2
        %v746 = vmul.f32 %v721, 0.2
        %v747 = vmul.f32 %v725, 0.2
        %v748 = vmul.f32 %v727, 0.2
        %v749 = vmul.f32 %v731, 0.2
        %v750 = vmul.f32 %v733, 0.2
        %v751 = vsel %vm735, %v713, %v743
        %v752 = vsel %vm736, %v715, %v744
        %v753 = vsel %vm737, %v719, %v745
        %v754 = vsel %vm738, %v721, %v746
        %v755 = vsel %vm739, %v725, %v747
        %v756 = vsel %vm740, %v727, %v748
        %v757 = vsel %vm741, %v731, %v749
        %v758 = vsel %vm742, %v733, %v750
        %v759 = vld [vmem:[%s4] sm:$0xff]
        %v760 = vld [vmem:[%s4 + $0x8] sm:$0xff]
        %v761 = vld [vmem:[%s4 + $0x10] sm:$0xff]
        %v762 = vld [vmem:[%s4 + $0x18] sm:$0xff]
        %v763 = vld [vmem:[%s5] sm:$0xff]
        %v764 = vld [vmem:[%s5 + $0x8] sm:$0xff]
        %v765 = vld [vmem:[%s5 + $0x10] sm:$0xff]
        %v766 = vld [vmem:[%s5 + $0x18] sm:$0xff]
        %768 = vset.pattern.permute.xlu0 0
        %769 = vperm.xlu0 %768, %v763
        %v770 = vpop.permute.xlu0 %769
        %773 = vset.pattern.permute.xlu0 0
        %774 = vperm.xlu0 %773, %v764
        %v775 = vpop.permute.xlu0 %774
        %778 = vset.pattern.permute.xlu0 0
        %779 = vperm.xlu0 %778, %v765
        %v780 = vpop.permute.xlu0 %779
        %783 = vset.pattern.permute.xlu0 0
        %784 = vperm.xlu0 %783, %v766
        %v785 = vpop.permute.xlu0 %784
        %vm787 = vcmask 261120
        %v789 = vsel %vm787, %v759, 0
        %v792 = vsel %vm787, %v760, 0
        %v795 = vsel %vm787, %v761, 0
        %v798 = vsel %vm787, %v762, 0
        %800 = vmatprep.subr.mxu0 0.0
        %801 = vmatpush1.msra.mxu0 0.0
        %802 = vmatprep.subr.mxu0 0.0
        %803 = vmatpush1.msra.mxu0 0.0
        %804 = vmatprep.subr.mxu0 0.0
        %805 = vmatpush1.msra.mxu0 0.0
        %806 = vmatprep.subr.mxu0 0.0
        %807 = vmatpush1.msra.mxu0 0.0
        %808 = vmatprep.subr.mxu0 0.0
        %809 = vmatpush1.msra.mxu0 0.0
        %810 = vmatprep.subr.mxu0 0.0
        %811 = vmatpush1.msra.mxu0 0.0
        %812 = vmatprep.subr.mxu0 0.0
        %813 = vmatpush1.msra.mxu0 0.0
        %814 = vmatprep.subr.mxu0 0.0
        %815 = vmatpush1.msra.mxu0 0.0
        %816 = vmatprep.subr.mxu0 0.0
        %817 = vmatpush1.msra.mxu0 0.0
        %818 = vmatprep.subr.mxu0 0.0
        %819 = vmatpush1.msra.mxu0 0.0
        %820 = vmatprep.subr.mxu0 0.0
        %821 = vmatpush1.msra.mxu0 0.0
        %822 = vmatprep.subr.mxu0 0.0
        %823 = vmatpush1.msra.mxu0 0.0
        %824 = vmatprep.subr.mxu0 %v758
        %825 = vmatpush1.msra.mxu0 %v757
        %826 = vmatprep.subr.mxu0 %v756
        %827 = vmatpush1.msra.mxu0 %v755
        %828 = vmatprep.subr.mxu0 %v754
        %829 = vmatpush1.msra.mxu0 %v753
        %830 = vmatprep.subr.mxu0 %v752
        %831 = vmatpush1.msra.mxu0 %v751
        %832 = vmatprep.subr.mxu0 0.0
        %833 = vmatpush2.msra.mxu0 0.0
        %834 = vmatprep.subr.mxu0 0.0
        %835 = vmatpush2.msra.mxu0 0.0
        %836 = vmatprep.subr.mxu0 0.0
        %837 = vmatpush2.msra.mxu0 0.0
        %838 = vmatprep.subr.mxu0 0.0
        %839 = vmatpush2.msra.mxu0 0.0
        %840 = vmatprep.subr.mxu0 0.0
        %841 = vmatpush2.msra.mxu0 0.0
        %842 = vmatprep.subr.mxu0 0.0
        %843 = vmatpush2.msra.mxu0 0.0
        %844 = vmatprep.subr.mxu0 0.0
        %845 = vmatpush2.msra.mxu0 0.0
        %846 = vmatprep.subr.mxu0 0.0
        %847 = vmatpush2.msra.mxu0 0.0
        %848 = vmatprep.subr.mxu0 0.0
        %849 = vmatpush2.msra.mxu0 0.0
        %850 = vmatprep.subr.mxu0 0.0
        %851 = vmatpush2.msra.mxu0 0.0
        %852 = vmatprep.subr.mxu0 0.0
        %853 = vmatpush2.msra.mxu0 0.0
        %854 = vmatprep.subr.mxu0 0.0
        %855 = vmatpush2.msra.mxu0 0.0
        %856 = vmatprep.subr.mxu0 0.0
        %857 = vmatpush2.msra.mxu0 0.0
        %858 = vmatprep.subr.mxu0 0.0
        %859 = vmatpush2.msra.mxu0 0.0
        %860 = vmatprep.subr.mxu0 0.0
        %861 = vmatpush2.msra.mxu0 0.0
        %862 = vmatprep.subr.mxu0 0.0
        %863 = vmatpush2.msra.mxu0 0.0
        %864 = vmatprep.mubr.f32.mxu0 0.0
        %865 = vmatmul.mubr.f32.gmra.mxu0 %v789
        %v866 = vpop.f32.mrf.mxu0
        %v867 = vadd.f32 %v770, %v866
        %v868 = vpop.f32.mrf.mxu0
        %v869 = vadd.f32 %v770, %v868
        %870 = vmatprep.mubr.f32.mxu0 0.0
        %871 = vmatmul.mubr.f32.gmra.mxu0 %v792
        %v872 = vpop.f32.mrf.mxu0
        %v873 = vadd.f32 %v775, %v872
        %v874 = vpop.f32.mrf.mxu0
        %v875 = vadd.f32 %v775, %v874
        %876 = vmatprep.mubr.f32.mxu0 0.0
        %877 = vmatmul.mubr.f32.gmra.mxu0 %v795
        %v878 = vpop.f32.mrf.mxu0
        %v879 = vadd.f32 %v780, %v878
        %v880 = vpop.f32.mrf.mxu0
        %v881 = vadd.f32 %v780, %v880
        %882 = vmatprep.mubr.f32.mxu0 0.0
        %883 = vmatmul.mubr.f32.gmra.mxu0 %v798
        %v884 = vpop.f32.mrf.mxu0
        %v885 = vadd.f32 %v785, %v884
        %v886 = vpop.f32.mrf.mxu0
        %v887 = vadd.f32 %v785, %v886
        %888 = vdwg.mxu0
        %889 = vst [vmem:[%s326] sm:$0xff] %v867
        %890 = vst [vmem:[%s326 + $0x8] sm:$0xff] %v869
        %891 = vst [vmem:[%s326 + $0x10] sm:$0xff] %v873
        %892 = vst [vmem:[%s326 + $0x18] sm:$0xff] %v875
        %893 = vst [vmem:[%s326 + $0x20] sm:$0xff] %v879
        %894 = vst [vmem:[%s326 + $0x28] sm:$0xff] %v881
        %895 = vst [vmem:[%s326 + $0x30] sm:$0xff] %v885
        %896 = vst [vmem:[%s326 + $0x38] sm:$0xff] %v887
        %s897 = sand.u32 %s182, 1
        %s898 = scalar_lea.sflag [#allocation6], %s897
        %s899 = sand.u32 %s182, 1
        %s900 = smul.addr %s899, 64
        %s901 = scalar_lea.vmem [#allocation5], %s900
        // Predicated region
        $region68: #{dilated_unit.1} parent=62 // pred_check
          %p902 = pneg %p192
        $region69: #{dilated_unit.1} parent=62 // pred_check_branch
          %904 = sbr.rel (%p902) target = $region71
        $region70: #{dilated_unit.1} parent=62 // pred_region
          %s905 = smul.u32 2, %s25
          %s907 = ssub.s32 1024, 1024
          %908 = vsyncadd %s898, %s907
          %s909 = smul.addr %s24, 32
          %s910 = sadd.s32 %s905, %s909
          %s911 = smul.addr %s910, 128
          %s912 = scalar_lea.hbm %s6, %s911
          %s913 = sshll.u32 %s901, 4
          %s914 = int_to_ptr.vmem [resolvable:$true] %s913
          %919 = dma.vmem_to_hbm [thread:$0]  %s914, 1024, %s912, %s898, 256, 1024, 16
        $region71: #{dilated_unit.1} parent=62 // pred_fallthru
          _
      $region63: #{dilated_unit.1} parent=5 // pred_fallthru
        _
      %p920 = scmp.le.s32.totalorder 2, %s15
      // Predicated region
      $region72: #{dilated_unit.1} parent=5 // pred_check
        %p921 = pneg %p920
      $region73: #{dilated_unit.1} parent=5 // pred_check_branch
        %923 = sbr.rel (%p921) target = $region75
      $region74: #{dilated_unit.1} parent=5 // pred_region
        %s924 = ssub.s32 %s15, 2
        // Predicated region
        $region76: #{dilated_unit.1} parent=74 // pred_check
          %p925 = pneg %p198
        $region77: #{dilated_unit.1} parent=74 // pred_check_branch
          %927 = sbr.rel (%p925) target = $region79
        $region78: #{dilated_unit.1} parent=74 // pred_region
          %s928 = sand.u32 %s183, 1
          %s929 = scalar_lea.sflag [#allocation6], %s928
          %s930 = sand.u32 %s183, 1
          %s931 = smul.addr %s930, 64
          %s932 = scalar_lea.vmem [#allocation5], %s931
          %933 = dma.done %s929, 1024
        $region79: #{dilated_unit.1} parent=74 // pred_fallthru
          _
      $region75: #{dilated_unit.1} parent=5 // pred_fallthru
        _
    $region6: #{dilated_unit.1} parent=1 // loop_footer
      %s19 = sadd.s32 1, %s15
    $region7: #{dilated_unit.1} parent=1 // loop_footer_branch
      %14 = sbr.rel target = $region3
    $region8: #{dilated_unit.1} parent=1 // loop_exit
      _
    %934 = vsyncpa [#allocation6], 1
    %s935 = scalar_lea.sflag [#allocation6], 1
    %936 = vsyncpa %s935, 1

</llo_original>
